<compile_context>
chip_gen: v5e
topology: v5e:2x2
jax: 0.10.0
libtpu: 0.0.40
codegen_flags: <defaults>
</compile_context>

<pallas_src>
import functools

import jax
import jax.numpy as jnp
from jax import lax
from jax.experimental import pallas as pl
from jax.experimental.pallas import tpu as pltpu


def _self_attention_kernel(x_ref, w_ref, b_ref, gamma_ref, out_ref, *,
                           bt, c, use_bf16_exp):
    """One grid step = `bt` batch elements, each (C, N) channels x pixels.

    Fused projection layout in w_ref / b_ref (rows):
      [0, C)      folded query/key weight (Wk^T Wq), bias Wk^T bq
      [C, 2C)     value weight Wv, bias bv
      2C          zero weight, bias 1  -> "ones" value row (softmax row-sum)
      (2C, 2C+8)  zero pad (keeps the static slices sublane-aligned)
    """
    gamma = gamma_ref[0]

    def one_image(b, carry):
        x = x_ref[b]                                   # (C, N) f32, kept for residual
        x16 = x.astype(jnp.bfloat16)

        # Single fused projection matmul (was two under-filled M=C matmuls).
        proj = jnp.dot(w_ref[...], x16,
                       preferred_element_type=jnp.float32) + b_ref[...]   # (2C+8, N)
        aq16 = proj[:c].astype(jnp.bfloat16)           # (C, N)
        vext16 = proj[c:].astype(jnp.bfloat16)         # (C+8, N): v rows, ones row, pad

        # energy[i, j] = aq[:, i] . x[:, j]  (contraction over C via dimension_numbers;
        # no explicit transpose / relayout of the lane-dense (C, N) operands).
        energy = lax.dot_general(
            aq16, x16, dimension_numbers=(((0,), (0,)), ((), ())),
            preferred_element_type=jnp.float32)        # (N, N) f32

        # Numerically stable, UNNORMALIZED softmax; normalization is applied to the
        # small (C, N) output below.  bf16 exp on v6e/v7x (bf16 EUP -> ~2x throughput,
        # no separate f32->bf16 pack); f32 exp kept on v5e.
        m = jnp.max(energy, axis=-1, keepdims=True)    # (N, 1)
        if use_bf16_exp:
            p16 = jnp.exp((energy - m).astype(jnp.bfloat16))     # (N, N) bf16
        else:
            p16 = jnp.exp(energy - m).astype(jnp.bfloat16)       # (N, N) bf16

        # Apply attention AND compute row sums in ONE MXU pass:
        #   o_ext[r, i] = sum_j vext[r, j] * p[i, j]
        # rows [0, C) -> attention output, row C -> sum_j p[i, j].
        o_ext = lax.dot_general(
            vext16, p16, dimension_numbers=(((1,), (1,)), ((), ())),
            preferred_element_type=jnp.float32)        # (C+8, N) f32
        o = o_ext[:c]                                  # (C, N)
        r = o_ext[c:c + 1]                             # (1, N) row sums (>= 1)

        inv = pl.reciprocal(r, approx=True)            # EUP slot, essentially free
        out_ref[b] = gamma * (o * inv) + x             # residual add in f32
        return carry

    if bt == 1:
        one_image(0, 0)
    else:
        # fori_loop (not a static Python loop) so the (N, N) intermediates of
        # different images in the same grid step do not have overlapping live ranges.
        lax.fori_loop(0, bt, one_image, 0)


def _use_bf16_exp():
    """bf16 VPU/EUP exists on v6e/v7x; keep f32 softmax math on v5 and older."""
    try:
        kind = jax.devices()[0].device_kind.lower()
    except Exception:
        return False
    return not any(tag in kind for tag in ("v2", "v3", "v4", "v5"))


def _vmem_limit_bytes(C, N, bt):
    """Size scoped VMEM for the N^2 intermediates; cap below physical VMEM."""
    n2 = N * N
    need = (n2 * (4 + 4 + 2)                 # energy f32, (f32 exp worst case), p16
            + (2 * C + 8) * N * 6            # fused projection f32 + bf16 slices
            + (C + 8) * N * 4                # o_ext f32
            + 4 * bt * C * N * 4 * 2         # double-buffered x in / out + casts
            + (4 << 20))                     # headroom
    try:
        cap = getattr(pltpu.get_tpu_info(), "vmem_capacity_bytes", 64 << 20)
    except Exception:
        cap = 64 << 20                       # conservative (v7x physical VMEM)
    return int(min(max(need, 32 << 20), int(cap * 0.9)))


def _default_bt(B, N):
    """Images per grid step: amortize per-step overhead at small N, but keep the
    grid length >= 2 when B allows it (fills both v7x TensorCores)."""
    if N > 512:
        return 1
    target_steps = 2 if B >= 2 else 1
    bt = max(1, B // target_steps)
    while B % bt != 0:
        bt -= 1
    return bt


def self_attention_pallas(x_nchw, wq, bq, wk, bk, wv, bv, gamma, *, bt=None):
    """Forward pass of the PyTorch SelfAttention module (with_attn=False path).

    x_nchw : (B, C, W, H) float32
    wq, wk : (C // 8, C)  conv-style (out_channels, in_channels) 1x1 weights
    wv     : (C, C)
    bq, bk : (C // 8,), bv : (C,), gamma : scalar
    Note: bk only contributes terms constant along the softmax axis, so it cancels
    exactly and is not used (accepted for interface parity).
    """
    B, C, W, H = x_nchw.shape
    N = W * H
    assert C % 8 == 0, "channel count must be sublane-aligned (multiple of 8)"
    del bk  # cancels in the softmax (row-constant contribution)

    # NCHW -> (B, C, N): a free reshape, no transpose.
    x_bcn = x_nchw.reshape(B, C, N).astype(jnp.float32)

    # Fused projection weight/bias (see kernel docstring for the row layout).
    pad = 8
    aqk = wk.T @ wq                                                # (C, C) = (Wk^T Wq)
    bqk = wk.T @ bq                                                # (C,)
    w_all = jnp.concatenate(
        [aqk, wv, jnp.zeros((pad, C), jnp.float32)], axis=0
    ).astype(jnp.bfloat16)                                         # (2C+8, C)
    b_all = jnp.concatenate(
        [bqk, bv, jnp.ones((1,), jnp.float32), jnp.zeros((pad - 1,), jnp.float32)]
    ).reshape(2 * C + pad, 1).astype(jnp.float32)                  # (2C+8, 1)
    # (Bias adds could also be folded into the matmul via an augmented ones row of
    # x; kept as a cheap broadcast-add on the small (2C+8, N) tile.)

    gamma1 = jnp.asarray(gamma, jnp.float32).reshape(1)            # scalar -> SMEM

    if bt is None:
        bt = _default_bt(B, N)
    assert B % bt == 0, "bt must divide the batch size"
    grid_b = B // bt

    kernel = functools.partial(_self_attention_kernel, bt=bt, c=C,
                               use_bf16_exp=_use_bf16_exp())
    fixed = lambda i: (0, 0)   # weights/biases: same block for every grid step

    out_bcn = pl.pallas_call(
        kernel,
        out_shape=jax.ShapeDtypeStruct((B, C, N), jnp.float32),
        grid_spec=pltpu.PrefetchScalarGridSpec(
            num_scalar_prefetch=0,
            grid=(grid_b,),
            in_specs=[
                pl.BlockSpec((bt, C, N), lambda i: (i, 0, 0)),        # x
                pl.BlockSpec((2 * C + pad, C), fixed),                # fused weights
                pl.BlockSpec((2 * C + pad, 1), fixed),                # fused biases
                pl.BlockSpec(memory_space=pltpu.MemorySpace.SMEM),    # gamma (scalar)
            ],
            out_specs=pl.BlockSpec((bt, C, N), lambda i: (i, 0, 0)),
        ),
        compiler_params=pltpu.CompilerParams(
            # Batch-group axis is independent work -> shards across v7x's two
            # TensorCores (no-op on single-TC v5e/v6e).
            dimension_semantics=("parallel",),
            vmem_limit_bytes=_vmem_limit_bytes(C, N, bt),
        ),
    )(x_bcn, w_all, b_all, gamma1)

    # (B, C, N) -> NCHW: free reshape.
    return out_bcn.reshape(B, C, W, H)


def _reference(x_nchw, wq, bq, wk, bk, wv, bv, gamma):
    """Pure-JAX reference mirroring the PyTorch forward (unfolded, all f32)."""
    B, C, W, H = x_nchw.shape
    N = W * H
    x = x_nchw.reshape(B, C, N)                                   # (B, C, N)
    q = jnp.einsum('oc,bcn->bno', wq, x) + bq                     # (B, N, C8)
    k = jnp.einsum('oc,bcn->bon', wk, x) + bk[:, None]            # (B, C8, N)
    energy = jnp.einsum('bno,bom->bnm', q, k)                     # (B, N, N)
    attn = jax.nn.softmax(energy, axis=-1)
    v = jnp.einsum('oc,bcn->bon', wv, x) + bv[:, None]            # (B, C, N)
    out = jnp.einsum('bcn,bmn->bcm', v, attn)                     # (B, C, N)
    return gamma * out.reshape(B, C, W, H) + x_nchw


if __name__ == "__main__":
    B, C, W, H = 2, 32, 16, 16       # in_dim = 32 -> query/key project to 32 // 8 = 4
    C8 = C // 8                      # N = W*H = 256 -> lane-dense (C, N) tiles

    key = jax.random.PRNGKey(0)
    kx, k1, k2, k3, k4, k5, k6 = jax.random.split(key, 7)

    x = jax.random.normal(kx, (B, C, W, H), dtype=jnp.float32)

    # Conv2d(kernel_size=1) weights in (out_channels, in_channels) layout.
    wq = jax.random.normal(k1, (C8, C), dtype=jnp.float32) * 0.1
    bq = jax.random.normal(k2, (C8,), dtype=jnp.float32) * 0.1
    wk = jax.random.normal(k3, (C8, C), dtype=jnp.float32) * 0.1
    bk = jax.random.normal(k4, (C8,), dtype=jnp.float32) * 0.1
    wv = jax.random.normal(k5, (C, C), dtype=jnp.float32) * 0.1
    bv = jax.random.normal(k6, (C,), dtype=jnp.float32) * 0.1
    # nn.Parameter(torch.zeros(1)); use a nonzero value so the attention path is
    # actually exercised (gamma=0 would reduce to out == x).
    gamma = jnp.float32(0.5)

    ref = _reference(x, wq, bq, wk, bk, wv, bv, gamma)

    # Default path: one image per grid step (grid length 2 -> both v7x TCs busy).
    out = jax.block_until_ready(
        self_attention_pallas(x, wq, bq, wk, bk, wv, bv, gamma))
    assert out.shape == (B, C, W, H)
    # bf16 MXU operands, bf16-quantized probabilities (bf16 exp on v6e/v7x) and the
    # approximate reciprocal -> slightly loose tolerance.
    assert jnp.allclose(out, ref, atol=3e-2, rtol=3e-2), "mismatch vs reference (bt=1)"

    # Also exercise the multi-image-per-grid-step path (amortizes per-step overhead
    # when N is small and B is large).
    out2 = jax.block_until_ready(
        self_attention_pallas(x, wq, bq, wk, bk, wv, bv, gamma, bt=B))
    assert jnp.allclose(out2, ref, atol=3e-2, rtol=3e-2), "mismatch vs reference (bt=B)"

    print("KERNEL_OK")
</pallas_src>

<mosaic_0001>
module attributes {stable_mosaic.version = 11 : i64} {
  func.func @_self_attention_kernel(%arg0: i32, %arg1: memref<1x32x256xf32, #tpu.memory_space<vmem>>, %arg2: memref<72x32xbf16, #tpu.memory_space<vmem>>, %arg3: memref<72x1xf32, #tpu.memory_space<vmem>>, %arg4: memref<1xf32, #tpu.memory_space<smem>>, %arg5: memref<1x32x256xf32, #tpu.memory_space<vmem>>) attributes {dimension_semantics = [#tpu.dimension_semantics<parallel>], iteration_bounds = array<i64: 2>, scalar_prefetch = 0 : i64, scratch_operands = 0 : i64, tpu.core_type = #tpu.core_type<tc>, window_params = [{transform_indices = @transform_0, window_bounds = array<i64: 1, 32, 256>}, {pipeline_mode = #tpu.pipeline_mode<synchronous>, transform_indices = @transform_1, window_bounds = array<i64: 72, 32>}, {pipeline_mode = #tpu.pipeline_mode<synchronous>, transform_indices = @transform_2, window_bounds = array<i64: 72, 1>}, {transform_indices = @transform_3, window_bounds = array<i64: 1>}, {transform_indices = @transform_4, window_bounds = array<i64: 1, 32, 256>}]} {
    %c0 = arith.constant 0 : index
    %0 = memref.load %arg4[%c0] : memref<1xf32, #tpu.memory_space<smem>>
    %c0_0 = arith.constant 0 : index
    %c0_1 = arith.constant 0 : index
    %c0_2 = arith.constant 0 : index
    %1 = vector.load %arg1[%c0_0, %c0_1, %c0_2] : memref<1x32x256xf32, #tpu.memory_space<vmem>>, vector<1x32x256xf32>
    %2 = vector.shape_cast %1 : vector<1x32x256xf32> to vector<32x256xf32>
    %3 = arith.truncf %2 : vector<32x256xf32> to vector<32x256xbf16>
    %c0_3 = arith.constant 0 : index
    %c0_4 = arith.constant 0 : index
    %4 = vector.load %arg2[%c0_3, %c0_4] : memref<72x32xbf16, #tpu.memory_space<vmem>>, vector<72x32xbf16>
    %cst = arith.constant dense<0.000000e+00> : vector<72x256xf32>
    %5 = tpu.matmul %4, %3, %cst {dimension_numbers = #tpu.dot_dimension_numbers<[1], [0], [0], [1], [0, 0, 1, 1], [], []>} : vector<72x32xbf16>, vector<32x256xbf16>, vector<72x256xf32> -> vector<72x256xf32>
    %c0_5 = arith.constant 0 : index
    %c0_6 = arith.constant 0 : index
    %6 = vector.load %arg3[%c0_5, %c0_6] : memref<72x1xf32, #tpu.memory_space<vmem>>, vector<72x1xf32>
    %7 = vector.broadcast %6 : vector<72x1xf32> to vector<72x256xf32>
    %8 = arith.addf %5, %7 : vector<72x256xf32>
    %9 = vector.extract_strided_slice %8 {offsets = [0, 0], sizes = [32, 256], strides = [1, 1]} : vector<72x256xf32> to vector<32x256xf32>
    %10 = arith.truncf %9 : vector<32x256xf32> to vector<32x256xbf16>
    %11 = vector.extract_strided_slice %8 {offsets = [32, 0], sizes = [40, 256], strides = [1, 1]} : vector<72x256xf32> to vector<40x256xf32>
    %12 = arith.truncf %11 : vector<40x256xf32> to vector<40x256xbf16>
    %cst_7 = arith.constant dense<0.000000e+00> : vector<256x256xf32>
    %13 = tpu.matmul %10, %3, %cst_7 {dimension_numbers = #tpu.dot_dimension_numbers<[0], [0], [1], [1], [0, 1, 1, 1], [], []>} : vector<32x256xbf16>, vector<32x256xbf16>, vector<256x256xf32> -> vector<256x256xf32>
    %cst_8 = arith.constant dense<0xFF800000> : vector<256xf32>
    %14 = vector.multi_reduction <maximumf>, %13, %cst_8 [1] : vector<256x256xf32> to vector<256xf32>
    %15 = vector.shape_cast %14 : vector<256xf32> to vector<256x1xf32>
    %16 = vector.broadcast %15 : vector<256x1xf32> to vector<256x256xf32>
    %17 = arith.subf %13, %16 : vector<256x256xf32>
    %18 = arith.truncf %17 : vector<256x256xf32> to vector<256x256xbf16>
    %19 = math.exp %18 : vector<256x256xbf16>
    %cst_9 = arith.constant dense<0.000000e+00> : vector<40x256xf32>
    %20 = tpu.matmul %12, %19, %cst_9 {dimension_numbers = #tpu.dot_dimension_numbers<[1], [1], [0], [0], [0, 0, 1, 0], [], []>} : vector<40x256xbf16>, vector<256x256xbf16>, vector<40x256xf32> -> vector<40x256xf32>
    %21 = vector.extract_strided_slice %20 {offsets = [0, 0], sizes = [32, 256], strides = [1, 1]} : vector<40x256xf32> to vector<32x256xf32>
    %22 = vector.extract_strided_slice %20 {offsets = [32, 0], sizes = [1, 256], strides = [1, 1]} : vector<40x256xf32> to vector<1x256xf32>
    %23 = tpu.reciprocal %22 {approx = true} : vector<1x256xf32> -> vector<1x256xf32>
    %24 = vector.broadcast %23 : vector<1x256xf32> to vector<32x256xf32>
    %25 = arith.mulf %21, %24 : vector<32x256xf32>
    %26 = vector.broadcast %0 : f32 to vector<32x256xf32>
    %27 = arith.mulf %26, %25 : vector<32x256xf32>
    %28 = arith.addf %27, %2 : vector<32x256xf32>
    %c0_10 = arith.constant 0 : index
    %c0_11 = arith.constant 0 : index
    %c0_12 = arith.constant 0 : index
    %29 = vector.load %arg5[%c0_10, %c0_11, %c0_12] : memref<1x32x256xf32, #tpu.memory_space<vmem>>, vector<1x32x256xf32>
    %30 = vector.shape_cast %29 : vector<1x32x256xf32> to vector<32x256xf32>
    %31 = vector.shape_cast %28 : vector<32x256xf32> to vector<1x32x256xf32>
    tpu.vector_store %arg5[%c0_10, %c0_11, %c0_12], %31 {strides = array<i32>} : memref<1x32x256xf32, #tpu.memory_space<vmem>>, vector<1x32x256xf32>,
    return
  }
  func.func @transform_0(%arg0: i32) -> (i32, i32, i32) {
    %c0_i32 = arith.constant 0 : i32
    %c0_i32_0 = arith.constant 0 : i32
    %c0_i32_1 = arith.constant 0 : i32
    return %arg0, %c0_i32, %c0_i32_0 : i32, i32, i32
  }
  func.func @transform_1(%arg0: i32) -> (i32, i32) {
    %c0_i32 = arith.constant 0 : i32
    %c0_i32_0 = arith.constant 0 : i32
    %c0_i32_1 = arith.constant 0 : i32
    return %c0_i32, %c0_i32_0 : i32, i32
  }
  func.func @transform_2(%arg0: i32) -> (i32, i32) {
    %c0_i32 = arith.constant 0 : i32
    %c0_i32_0 = arith.constant 0 : i32
    %c0_i32_1 = arith.constant 0 : i32
    return %c0_i32, %c0_i32_0 : i32, i32
  }
  func.func @transform_3(%arg0: i32) -> i32 {
    %c0_i32 = arith.constant 0 : i32
    %c0_i32_0 = arith.constant 0 : i32
    return %c0_i32 : i32
  }
  func.func @transform_4(%arg0: i32) -> (i32, i32, i32) {
    %c0_i32 = arith.constant 0 : i32
    %c0_i32_0 = arith.constant 0 : i32
    %c0_i32_1 = arith.constant 0 : i32
    return %arg0, %c0_i32, %c0_i32_0 : i32, i32, i32
  }
}

</mosaic_0001>

<llo_original>
// kernel: tpu_custom_call.1
$region0: #{tpu_custom_call.1}
  #allocation0 [shape = 'u32[]', space=smem, size = 0x4, offset = 0x4, fixed_abs, tag = 'smem constant byte address 0x4 - core index']
  #allocation1 [shape = 'u32[72,128]{1,0:T(1,128)}', space=vmem, size = 0x9000, scoped, tag = 'internal scratch']
  #allocation2 [shape = 'f32[1]{0:T(128)S(6)}', space=smem, size = 0x200, scoped, tag = 'scoped memory for tpu_custom_call.1']
  %s0 = inlined_call_operand.hbm [shape: f32[2,32,256], index: 0, kind: input, shape index: {}]
  %s1 = inlined_call_operand.vmem [shape: bf16[72,32], index: 1, kind: input, shape index: {}]
  %s2 = inlined_call_operand.vmem [shape: f32[72,1], index: 2, kind: input, shape index: {}]
  %s3 = inlined_call_operand.<no memory space> [shape: f32[1], index: 3, kind: input, shape index: {}]
  %s4 = inlined_call_operand.hbm [shape: f32[2,32,256], index: 4, kind: output, shape index: {}]
  %s5 = sld [smem:[#allocation0]]
  $region53: #{tpu_custom_call.1} parent=0
    _
  %s7 = ssub.s32 1, %s5
  %s8 = scalar_select 0, %s7, %s5
  %9 = sst [smem:[#allocation2]] %s3
  $region1: #{tpu_custom_call.1} parent=0
    #allocation3 [shape = 'u8[65536]{0}', space=vmem, size = 0x10000, scoped, tag = 'input window, operand 0']
    #allocation4 [shape = 's32[2]{0}', space=sflag, size = 0x8, scoped, tag = 'scoped memory for tpu_custom_call.1']
    #allocation5 [shape = 's32[2]{0}', space=sflag, size = 0x8, scoped, tag = 'scoped memory for tpu_custom_call.1']
    #allocation6 [shape = 'u8[65536]{0}', space=vmem, size = 0x10000, scoped, tag = 'output window, operand 0']
    %10 = vsyncpa [#allocation4], 0
    %s11 = scalar_lea.sflag [#allocation4], 1
    %12 = vsyncpa %s11, 0
    %13 = vsyncpa [#allocation5], 0
    %s14 = scalar_lea.sflag [#allocation5], 1
    %15 = vsyncpa %s14, 0
    loop: start=0, step=1, limit=4
    $region2: #{tpu_custom_call.1} parent=1 // loop_pre_header
      _
    $region3: #{tpu_custom_call.1} parent=1 // loop_header
      %s17 = sphi 0, %s21
      %p18 = scmp.ge.s32.totalorder %s17, 4
      %s27 = sphi 0, %s29
      %s30 = sphi 0, %s27
      %s31 = sphi 0, %s30
      %s47 = sphi 0, %s31
      %s51 = sphi 0, %s51
      %s53 = sphi 0, %s51
      %s54 = sphi 0, %s53
      %s68 = sphi 0, %s54
      %s72 = sphi 0, %s72
      %s74 = sphi 0, %s72
      %s75 = sphi 0, %s74
      %s89 = sphi 0, %s75
      %s93 = sphi 0, %s93
      %s95 = sphi 0, %s93
      %s96 = sphi 0, %s95
      %s110 = sphi 0, %s96
      %s116 = sphi 0, %s118
      %s119 = sphi 0, %s116
      %s120 = sphi 0, %s119
      %s136 = sphi 0, %s120
    $region4: #{tpu_custom_call.1} parent=1 // loop_header_branch
      %20 = sbr.rel (%p18) target = $region8
    $region5: #{tpu_custom_call.1} parent=1 // loop_body
      %s22 = ssub.s32 %s17, 1
      %s23 = ssub.s32 %s17, 2
      %s24 = sadd.s32 %s17, 1
      %s25 = ssub.s32 %s17, %s24
      %p26 = scmp.eq.s32.totalorder %s25, 0
      %s28 = sadd.s32 %s27, 1
      %s29 = scalar_select %p26, %s27, %s28
      %p32 = pneg %p26
      %p33 = scmp.eq.s32.totalorder %s17, 1
      %p34 = por %p32, %p33
      %p35 = scmp.ne.s32.totalorder %s27, %s30
      %p36 = scmp.eq.s32.totalorder %s17, 0
      %p37 = por %p35, %p36
      %p38 = scmp.ne.s32.totalorder %s27, %s30
      %p39 = scmp.eq.s32.totalorder %s22, 1
      %p40 = por %p38, %p39
      %p41 = scmp.ne.s32.totalorder %s30, %s31
      %p42 = scmp.eq.s32.totalorder %s22, 0
      %p43 = por %p41, %p42
      %p44 = scmp.ne.s32.totalorder %s30, %s31
      %p45 = scmp.eq.s32.totalorder %s23, 1
      %p46 = por %p44, %p45
      %p48 = scmp.ne.s32.totalorder %s31, %s47
      %p49 = scmp.eq.s32.totalorder %s23, 0
      %p50 = por %p48, %p49
      %s52 = sadd.s32 %s51, 1
      %p55 = scmp.eq.s32.totalorder %s17, 1
      %p56 = scmp.ne.s32.totalorder %s51, %s53
      %p57 = scmp.eq.s32.totalorder %s17, 0
      %p58 = por %p56, %p57
      %p59 = scmp.ne.s32.totalorder %s51, %s53
      %p60 = scmp.eq.s32.totalorder %s22, 1
      %p61 = por %p59, %p60
      %p62 = scmp.ne.s32.totalorder %s53, %s54
      %p63 = scmp.eq.s32.totalorder %s22, 0
      %p64 = por %p62, %p63
      %p65 = scmp.ne.s32.totalorder %s53, %s54
      %p66 = scmp.eq.s32.totalorder %s23, 1
      %p67 = por %p65, %p66
      %p69 = scmp.ne.s32.totalorder %s54, %s68
      %p70 = scmp.eq.s32.totalorder %s23, 0
      %p71 = por %p69, %p70
      %s73 = sadd.s32 %s72, 1
      %p76 = scmp.eq.s32.totalorder %s17, 1
      %p77 = scmp.ne.s32.totalorder %s72, %s74
      %p78 = scmp.eq.s32.totalorder %s17, 0
      %p79 = por %p77, %p78
      %p80 = scmp.ne.s32.totalorder %s72, %s74
      %p81 = scmp.eq.s32.totalorder %s22, 1
      %p82 = por %p80, %p81
      %p83 = scmp.ne.s32.totalorder %s74, %s75
      %p84 = scmp.eq.s32.totalorder %s22, 0
      %p85 = por %p83, %p84
      %p86 = scmp.ne.s32.totalorder %s74, %s75
      %p87 = scmp.eq.s32.totalorder %s23, 1
      %p88 = por %p86, %p87
      %p90 = scmp.ne.s32.totalorder %s75, %s89
      %p91 = scmp.eq.s32.totalorder %s23, 0
      %p92 = por %p90, %p91
      %s94 = sadd.s32 %s93, 1
      %p97 = scmp.eq.s32.totalorder %s17, 1
      %p98 = scmp.ne.s32.totalorder %s93, %s95
      %p99 = scmp.eq.s32.totalorder %s17, 0
      %p100 = por %p98, %p99
      %p101 = scmp.ne.s32.totalorder %s93, %s95
      %p102 = scmp.eq.s32.totalorder %s22, 1
      %p103 = por %p101, %p102
      %p104 = scmp.ne.s32.totalorder %s95, %s96
      %p105 = scmp.eq.s32.totalorder %s22, 0
      %p106 = por %p104, %p105
      %p107 = scmp.ne.s32.totalorder %s95, %s96
      %p108 = scmp.eq.s32.totalorder %s23, 1
      %p109 = por %p107, %p108
      %p111 = scmp.ne.s32.totalorder %s96, %s110
      %p112 = scmp.eq.s32.totalorder %s23, 0
      %p113 = por %p111, %p112
      %s114 = ssub.s32 %s17, %s24
      %p115 = scmp.eq.s32.totalorder %s114, 0
      %s117 = sadd.s32 %s116, 1
      %s118 = scalar_select %p115, %s116, %s117
      %p121 = pneg %p115
      %p122 = scmp.eq.s32.totalorder %s17, 1
      %p123 = por %p121, %p122
      %p124 = scmp.ne.s32.totalorder %s116, %s119
      %p125 = scmp.eq.s32.totalorder %s17, 0
      %p126 = por %p124, %p125
      %p127 = scmp.ne.s32.totalorder %s116, %s119
      %p128 = scmp.eq.s32.totalorder %s22, 1
      %p129 = por %p127, %p128
      %p130 = scmp.ne.s32.totalorder %s119, %s120
      %p131 = scmp.eq.s32.totalorder %s22, 0
      %p132 = por %p130, %p131
      %p133 = scmp.ne.s32.totalorder %s119, %s120
      %p134 = scmp.eq.s32.totalorder %s23, 1
      %p135 = por %p133, %p134
      %p137 = scmp.ne.s32.totalorder %s120, %s136
      %p138 = scmp.eq.s32.totalorder %s23, 0
      %p139 = por %p137, %p138
      %p140 = scmp.le.s32.totalorder 1, %s17
      %p141 = scmp.lt.s32.totalorder %s17, 3
      %p142 = pnand %p140, %p141
      %p143 = pneg %p142
      // Predicated region
      $region9: #{tpu_custom_call.1} parent=5 // pred_check
        _
      $region10: #{tpu_custom_call.1} parent=5 // pred_check_branch
        %145 = sbr.rel (%p142) target = $region12
      $region11: #{tpu_custom_call.1} parent=5 // pred_region
        %s146 = ssub.s32 %s17, 1
        // Predicated region
        $region13: #{tpu_custom_call.1} parent=11 // pred_check
          %p147 = pneg %p64
        $region14: #{tpu_custom_call.1} parent=11 // pred_check_branch
          %149 = sbr.rel (%p147) target = $region16
        $region15: #{tpu_custom_call.1} parent=11 // pred_region
          _
        $region16: #{tpu_custom_call.1} parent=11 // pred_fallthru
          _
        // Predicated region
        $region17: #{tpu_custom_call.1} parent=11 // pred_check
          %p150 = pneg %p85
        $region18: #{tpu_custom_call.1} parent=11 // pred_check_branch
          %152 = sbr.rel (%p150) target = $region20
        $region19: #{tpu_custom_call.1} parent=11 // pred_region
          _
        $region20: #{tpu_custom_call.1} parent=11 // pred_fallthru
          _
        // Predicated region
        $region21: #{tpu_custom_call.1} parent=11 // pred_check
          %p153 = pneg %p106
        $region22: #{tpu_custom_call.1} parent=11 // pred_check_branch
          %155 = sbr.rel (%p153) target = $region24
        $region23: #{tpu_custom_call.1} parent=11 // pred_region
          _
        $region24: #{tpu_custom_call.1} parent=11 // pred_fallthru
          _
      $region12: #{tpu_custom_call.1} parent=5 // pred_fallthru
        _
      %p156 = scmp.lt.s32.totalorder %s17, 2
      // Predicated region
      $region25: #{tpu_custom_call.1} parent=5 // pred_check
        %p157 = pneg %p156
      $region26: #{tpu_custom_call.1} parent=5 // pred_check_branch
        %159 = sbr.rel (%p157) target = $region28
      $region27: #{tpu_custom_call.1} parent=5 // pred_region
        // Predicated region
        $region29: #{tpu_custom_call.1} parent=27 // pred_check
          %p160 = pneg %p37
        $region30: #{tpu_custom_call.1} parent=27 // pred_check_branch
          %162 = sbr.rel (%p160) target = $region32
        $region31: #{tpu_custom_call.1} parent=27 // pred_region
          %s163 = sand.u32 %s27, 1
          %s164 = scalar_lea.sflag [#allocation4], %s163
          %s165 = sand.u32 %s27, 1
          %s166 = smul.addr %s165, 64
          %s167 = scalar_lea.vmem [#allocation3], %s166
          %169 = vsyncadd %s164, 0
          %s170 = smul.addr %s17, 8
          %s171 = smul.addr %s170, 8
          %s172 = scalar_lea.hbm %s0, %s171
          %s173 = sshll.u32 %s172, 4
          %s174 = int_to_ptr.hbm [resolvable:$true] %s173
          %s175 = sshll.u32 %s167, 4
          %s176 = int_to_ptr.vmem [resolvable:$true] %s175
          %181 = dma.hbm_to_vmem [thread:$0]  %s174, 1024, %s176, %s164, 256, 256, 16
        $region32: #{tpu_custom_call.1} parent=27 // pred_fallthru
          _
      $region28: #{tpu_custom_call.1} parent=5 // pred_fallthru
        _
      %p182 = scmp.le.s32.totalorder 1, %s17
      %p183 = scmp.lt.s32.totalorder %s17, 3
      %p184 = pnand %p182, %p183
      %p185 = pneg %p184
      // Predicated region
      $region33: #{tpu_custom_call.1} parent=5 // pred_check
        _
      $region34: #{tpu_custom_call.1} parent=5 // pred_check_branch
        %187 = sbr.rel (%p184) target = $region36
      $region35: #{tpu_custom_call.1} parent=5 // pred_region
        %s188 = ssub.s32 %s17, 1
        %s189 = sand.u32 %s30, 1
        %s190 = scalar_lea.sflag [#allocation4], %s189
        %s191 = sand.u32 %s30, 1
        %s192 = smul.addr %s191, 64
        %s193 = scalar_lea.vmem [#allocation3], %s192
        // Predicated region
        $region37: #{tpu_custom_call.1} parent=35 // pred_check
          %p194 = pneg %p43
        $region38: #{tpu_custom_call.1} parent=35 // pred_check_branch
          %196 = sbr.rel (%p194) target = $region40
        $region39: #{tpu_custom_call.1} parent=35 // pred_region
          %198 = dma.done %s190, 1024
        $region40: #{tpu_custom_call.1} parent=35 // pred_fallthru
          _
        %s199 = sand.u32 %s30, 1
        %s200 = scalar_lea.sflag [#allocation4], %s199
        %s201 = sand.u32 %s30, 1
        %s202 = smul.addr %s201, 64
        %s203 = scalar_lea.vmem [#allocation3], %s202
        %p204 = pneg %p43
        %p205 = pneg %p40
        %p206 = pneg %p64
        %p207 = pneg %p61
        %p208 = pneg %p85
        %p209 = pneg %p82
        %p210 = pneg %p106
        %p211 = pneg %p103
        %p212 = pneg %p132
        %p213 = pneg %p129
        %s214 = sand.u32 %s119, 1
        %s215 = scalar_lea.sflag [#allocation5], %s214
        %s216 = sand.u32 %s119, 1
        %s217 = smul.addr %s216, 64
        %s218 = scalar_lea.vmem [#allocation6], %s217
        %s220 = sld [smem:[#allocation2]]
        %v221 = vld [vmem:[%s193] sm:$0xff]
        %v222 = vld [vmem:[%s193 + $0x8] sm:$0xff]
        %v223 = vld [vmem:[%s193 + $0x10] sm:$0xff]
        %v224 = vld [vmem:[%s193 + $0x18] sm:$0xff]
        %v225 = vld [vmem:[%s193 + $0x20] sm:$0xff]
        %v226 = vld [vmem:[%s193 + $0x28] sm:$0xff]
        %v227 = vld [vmem:[%s193 + $0x30] sm:$0xff]
        %v228 = vld [vmem:[%s193 + $0x38] sm:$0xff]
        %v229 = vpack.c.bf16 %v223, %v221
        %v230 = vpack.c.bf16 %v224, %v222
        %v231 = vpack.c.bf16 %v227, %v225
        %v232 = vpack.c.bf16 %v228, %v226
        %v233 = vld [vmem:[%s1] sm:$0xf]
        %v234 = vld [vmem:[%s1 + $0x4] sm:$0xf]
        %v235 = vld [vmem:[%s1 + $0x8] sm:$0xf]
        %v236 = vld [vmem:[%s1 + $0xc] sm:$0xf]
        %v237 = vld [vmem:[%s1 + $0x10] sm:$0xf]
        %v238 = vld [vmem:[%s1 + $0x14] sm:$0xf]
        %v239 = vld [vmem:[%s1 + $0x18] sm:$0xf]
        %v240 = vld [vmem:[%s1 + $0x1c] sm:$0xf]
        %v241 = vld [vmem:[%s1 + $0x20] sm:$0xf]
        %v242 = vld [vmem:[%s2] sm:$0xff]
        %v243 = vld [vmem:[%s2 + $0x8] sm:$0xff]
        %v244 = vld [vmem:[%s2 + $0x10] sm:$0xff]
        %v245 = vld [vmem:[%s2 + $0x18] sm:$0xff]
        %v246 = vld [vmem:[%s2 + $0x20] sm:$0xff]
        %v247 = vld [vmem:[%s2 + $0x28] sm:$0xff]
        %v248 = vld [vmem:[%s2 + $0x30] sm:$0xff]
        %v249 = vld [vmem:[%s2 + $0x38] sm:$0xff]
        %v250 = vld [vmem:[%s2 + $0x40] sm:$0xff]
        %252 = vset.pattern.permute.xlu0 0
        %253 = vperm.xlu0 %252, %v242
        %v254 = vpop.permute.xlu0 %253
        %257 = vset.pattern.permute.xlu0 0
        %258 = vperm.xlu0 %257, %v243
        %v259 = vpop.permute.xlu0 %258
        %262 = vset.pattern.permute.xlu0 0
        %263 = vperm.xlu0 %262, %v244
        %v264 = vpop.permute.xlu0 %263
        %267 = vset.pattern.permute.xlu0 0
        %268 = vperm.xlu0 %267, %v245
        %v269 = vpop.permute.xlu0 %268
        %272 = vset.pattern.permute.xlu0 0
        %273 = vperm.xlu0 %272, %v246
        %v274 = vpop.permute.xlu0 %273
        %277 = vset.pattern.permute.xlu0 0
        %278 = vperm.xlu0 %277, %v247
        %v279 = vpop.permute.xlu0 %278
        %282 = vset.pattern.permute.xlu0 0
        %283 = vperm.xlu0 %282, %v248
        %v284 = vpop.permute.xlu0 %283
        %287 = vset.pattern.permute.xlu0 0
        %288 = vperm.xlu0 %287, %v249
        %v289 = vpop.permute.xlu0 %288
        %292 = vset.pattern.permute.xlu0 0
        %293 = vperm.xlu0 %292, %v250
        %v294 = vpop.permute.xlu0 %293
        %v305 = vunpack.c.l.b16 %v233
        %v306 = vunpack.c.l.b16 %v234
        %v307 = vunpack.c.l.b16 %v235
        %v308 = vunpack.c.l.b16 %v236
        %v309 = vunpack.c.l.b16 %v237
        %v310 = vunpack.c.l.b16 %v238
        %v311 = vunpack.c.l.b16 %v239
        %v312 = vunpack.c.l.b16 %v240
        %v313 = vunpack.c.l.b16 %v241
        %v314 = vpack.c.b16 %v306, %v305
        %v315 = vpack.c.b16 %v308, %v307
        %v316 = vpack.c.b16 %v310, %v309
        %v317 = vpack.c.b16 %v312, %v311
        %v318 = vpack.c.b16 %v313, %v313
        %vm319 = vcmask 261120
        %v321 = vsel %vm319, %v314, 0
        %v324 = vsel %vm319, %v315, 0
        %v327 = vsel %vm319, %v316, 0
        %v330 = vsel %vm319, %v317, 0
        %v333 = vsel %vm319, %v318, 0
        %335 = vmatpush.bf16.msra.mxu0 0
        %336 = vmatpush.bf16.msra.mxu0 0
        %337 = vmatpush.bf16.msra.mxu0 0
        %338 = vmatpush.bf16.msra.mxu0 0
        %339 = vmatpush.bf16.msra.mxu0 0
        %340 = vmatpush.bf16.msra.mxu0 0
        %341 = vmatpush.bf16.msra.mxu0 %v231
        %342 = vmatpush.bf16.msra.mxu0 %v229
        %343 = vmatmul.bf16.gmra.mxu0 %v321
        %v344 = vpop.f32.mrf.mxu0
        %v345 = vadd.f32 %v254, %v344
        %v346 = vpop.f32.mrf.mxu0
        %v347 = vadd.f32 %v259, %v346
        %348 = vmatmul.bf16.gmra.mxu0 %v324
        %v349 = vpop.f32.mrf.mxu0
        %v350 = vadd.f32 %v264, %v349
        %v351 = vpop.f32.mrf.mxu0
        %v352 = vadd.f32 %v269, %v351
        %353 = vmatmul.bf16.gmra.mxu0 %v327
        %v354 = vpop.f32.mrf.mxu0
        %v355 = vadd.f32 %v274, %v354
        %v356 = vpop.f32.mrf.mxu0
        %v357 = vadd.f32 %v279, %v356
        %358 = vmatmul.bf16.gmra.mxu0 %v330
        %v359 = vpop.f32.mrf.mxu0
        %v360 = vadd.f32 %v284, %v359
        %v361 = vpop.f32.mrf.mxu0
        %v362 = vadd.f32 %v289, %v361
        %363 = vmatmul.bf16.gmra.mxu0 %v333
        %v364 = vpop.f32.mrf.mxu0
        %v365 = vadd.f32 %v294, %v364
        %v366 = vpop.f32.mrf.mxu0
        %367 = vdwg.mxu0
        %368 = vmatpush.bf16.msra.mxu0 0
        %369 = vmatpush.bf16.msra.mxu0 0
        %370 = vmatpush.bf16.msra.mxu0 0
        %371 = vmatpush.bf16.msra.mxu0 0
        %372 = vmatpush.bf16.msra.mxu0 0
        %373 = vmatpush.bf16.msra.mxu0 0
        %374 = vmatpush.bf16.msra.mxu0 %v232
        %375 = vmatpush.bf16.msra.mxu0 %v230
        %376 = vmatmul.bf16.gmra.mxu0 %v321
        %v377 = vpop.f32.mrf.mxu0
        %v378 = vadd.f32 %v254, %v377
        %v379 = vpop.f32.mrf.mxu0
        %v380 = vadd.f32 %v259, %v379
        %381 = vmatmul.bf16.gmra.mxu0 %v324
        %v382 = vpop.f32.mrf.mxu0
        %v383 = vadd.f32 %v264, %v382
        %v384 = vpop.f32.mrf.mxu0
        %v385 = vadd.f32 %v269, %v384
        %386 = vmatmul.bf16.gmra.mxu0 %v327
        %v387 = vpop.f32.mrf.mxu0
        %v388 = vadd.f32 %v274, %v387
        %v389 = vpop.f32.mrf.mxu0
        %v390 = vadd.f32 %v279, %v389
        %391 = vmatmul.bf16.gmra.mxu0 %v330
        %v392 = vpop.f32.mrf.mxu0
        %v393 = vadd.f32 %v284, %v392
        %v394 = vpop.f32.mrf.mxu0
        %v395 = vadd.f32 %v289, %v394
        %396 = vmatmul.bf16.gmra.mxu0 %v333
        %v397 = vpop.f32.mrf.mxu0
        %v398 = vadd.f32 %v294, %v397
        %v399 = vpop.f32.mrf.mxu0
        %400 = vdwg.mxu0
        %v401 = vpack.c.bf16 %v347, %v345
        %v402 = vpack.c.bf16 %v380, %v378
        %v403 = vpack.c.bf16 %v352, %v350
        %v404 = vpack.c.bf16 %v385, %v383
        %v405 = vpack.c.bf16 %v357, %v355
        %v406 = vpack.c.bf16 %v390, %v388
        %v407 = vpack.c.bf16 %v362, %v360
        %v408 = vpack.c.bf16 %v395, %v393
        %v409 = vpack.c.bf16 %v365, %v365
        %v410 = vpack.c.bf16 %v398, %v398
        %411 = vxpose.binary.xlu0.c.b16.start [1/16] %v402, %v401, 128
        %412 = vxpose.binary.xlu0.c.b16.cont [2/16] %v404, %v403, 128
        %413 = vxpose.binary.xlu0.c.b16.cont [3/16] 0, 0, 128
        %414 = vxpose.binary.xlu0.c.b16.cont [4/16] 0, 0, 128
        %415 = vxpose.binary.xlu0.c.b16.cont [5/16] 0, 0, 128
        %416 = vxpose.binary.xlu0.c.b16.cont [6/16] 0, 0, 128
        %417 = vxpose.binary.xlu0.c.b16.cont [7/16] 0, 0, 128
        %418 = vxpose.binary.xlu0.c.b16.end [8/16] 0, 0, 128
        %v419 = vpop.trf.xlu0
        %v420 = vpop.trf.xlu0
        %v421 = vpop.trf.xlu0
        %v422 = vpop.trf.xlu0
        %v423 = vpop.trf.xlu0
        %v424 = vpop.trf.xlu0
        %v425 = vpop.trf.xlu0
        %v426 = vpop.trf.xlu0
        %v427 = vpop.trf.xlu0
        %v428 = vpop.trf.xlu0
        %v429 = vpop.trf.xlu0
        %v430 = vpop.trf.xlu0
        %v431 = vpop.trf.xlu0
        %v432 = vpop.trf.xlu0
        %v433 = vpop.trf.xlu0
        %v434 = vpop.trf.xlu0
        %v436 = vsel %vm319, %v419, 0
        %v439 = vsel %vm319, %v421, 0
        %v442 = vsel %vm319, %v423, 0
        %v445 = vsel %vm319, %v425, 0
        %v448 = vsel %vm319, %v427, 0
        %v451 = vsel %vm319, %v429, 0
        %v454 = vsel %vm319, %v431, 0
        %v457 = vsel %vm319, %v433, 0
        %v460 = vsel %vm319, %v420, 0
        %v463 = vsel %vm319, %v422, 0
        %v466 = vsel %vm319, %v424, 0
        %v469 = vsel %vm319, %v426, 0
        %v472 = vsel %vm319, %v428, 0
        %v475 = vsel %vm319, %v430, 0
        %v478 = vsel %vm319, %v432, 0
        %v481 = vsel %vm319, %v434, 0
        %483 = vmatpush.bf16.msra.mxu0 0
        %484 = vmatpush.bf16.msra.mxu0 0
        %485 = vmatpush.bf16.msra.mxu0 0
        %486 = vmatpush.bf16.msra.mxu0 0
        %487 = vmatpush.bf16.msra.mxu0 0
        %488 = vmatpush.bf16.msra.mxu0 0
        %489 = vmatpush.bf16.msra.mxu0 %v231
        %490 = vmatpush.bf16.msra.mxu0 %v229
        %491 = vmatmul.bf16.gmra.mxu0 %v436
        %v492 = vpop.f32.mrf.mxu0
        %v493 = vadd.f32 0.0, %v492
        %v494 = vpop.f32.mrf.mxu0
        %v495 = vadd.f32 0.0, %v494
        %496 = vmatmul.bf16.gmra.mxu0 %v439
        %v497 = vpop.f32.mrf.mxu0
        %v498 = vadd.f32 0.0, %v497
        %v499 = vpop.f32.mrf.mxu0
        %v500 = vadd.f32 0.0, %v499
        %501 = vmatmul.bf16.gmra.mxu0 %v442
        %v502 = vpop.f32.mrf.mxu0
        %v503 = vadd.f32 0.0, %v502
        %v504 = vpop.f32.mrf.mxu0
        %v505 = vadd.f32 0.0, %v504
        %506 = vmatmul.bf16.gmra.mxu0 %v445
        %v507 = vpop.f32.mrf.mxu0
        %v508 = vadd.f32 0.0, %v507
        %v509 = vpop.f32.mrf.mxu0
        %v510 = vadd.f32 0.0, %v509
        %511 = vmatmul.bf16.gmra.mxu0 %v448
        %v512 = vpop.f32.mrf.mxu0
        %v513 = vadd.f32 0.0, %v512
        %v514 = vpop.f32.mrf.mxu0
        %v515 = vadd.f32 0.0, %v514
        %516 = vmatmul.bf16.gmra.mxu0 %v451
        %v517 = vpop.f32.mrf.mxu0
        %v518 = vadd.f32 0.0, %v517
        %v519 = vpop.f32.mrf.mxu0
        %v520 = vadd.f32 0.0, %v519
        %521 = vmatmul.bf16.gmra.mxu0 %v454
        %v522 = vpop.f32.mrf.mxu0
        %v523 = vadd.f32 0.0, %v522
        %v524 = vpop.f32.mrf.mxu0
        %v525 = vadd.f32 0.0, %v524
        %526 = vmatmul.bf16.gmra.mxu0 %v457
        %v527 = vpop.f32.mrf.mxu0
        %v528 = vadd.f32 0.0, %v527
        %v529 = vpop.f32.mrf.mxu0
        %v530 = vadd.f32 0.0, %v529
        %531 = vmatmul.bf16.gmra.mxu0 %v460
        %v532 = vpop.f32.mrf.mxu0
        %v533 = vadd.f32 0.0, %v532
        %v534 = vpop.f32.mrf.mxu0
        %v535 = vadd.f32 0.0, %v534
        %536 = vmatmul.bf16.gmra.mxu0 %v463
        %v537 = vpop.f32.mrf.mxu0
        %v538 = vadd.f32 0.0, %v537
        %v539 = vpop.f32.mrf.mxu0
        %v540 = vadd.f32 0.0, %v539
        %541 = vmatmul.bf16.gmra.mxu0 %v466
        %v542 = vpop.f32.mrf.mxu0
        %v543 = vadd.f32 0.0, %v542
        %v544 = vpop.f32.mrf.mxu0
        %v545 = vadd.f32 0.0, %v544
        %546 = vmatmul.bf16.gmra.mxu0 %v469
        %v547 = vpop.f32.mrf.mxu0
        %v548 = vadd.f32 0.0, %v547
        %v549 = vpop.f32.mrf.mxu0
        %v550 = vadd.f32 0.0, %v549
        %551 = vmatmul.bf16.gmra.mxu0 %v472
        %v552 = vpop.f32.mrf.mxu0
        %v553 = vadd.f32 0.0, %v552
        %v554 = vpop.f32.mrf.mxu0
        %v555 = vadd.f32 0.0, %v554
        %556 = vmatmul.bf16.gmra.mxu0 %v475
        %v557 = vpop.f32.mrf.mxu0
        %v558 = vadd.f32 0.0, %v557
        %v559 = vpop.f32.mrf.mxu0
        %v560 = vadd.f32 0.0, %v559
        %561 = vmatmul.bf16.gmra.mxu0 %v478
        %v562 = vpop.f32.mrf.mxu0
        %v563 = vadd.f32 0.0, %v562
        %v564 = vpop.f32.mrf.mxu0
        %v565 = vadd.f32 0.0, %v564
        %566 = vmatmul.bf16.gmra.mxu0 %v481
        %v567 = vpop.f32.mrf.mxu0
        %v568 = vadd.f32 0.0, %v567
        %v569 = vpop.f32.mrf.mxu0
        %v570 = vadd.f32 0.0, %v569
        %571 = vdwg.mxu0
        %572 = vmatpush.bf16.msra.mxu0 0
        %573 = vmatpush.bf16.msra.mxu0 0
        %574 = vmatpush.bf16.msra.mxu0 0
        %575 = vmatpush.bf16.msra.mxu0 0
        %576 = vmatpush.bf16.msra.mxu0 0
        %577 = vmatpush.bf16.msra.mxu0 0
        %578 = vmatpush.bf16.msra.mxu0 %v232
        %579 = vmatpush.bf16.msra.mxu0 %v230
        %580 = vmatmul.bf16.gmra.mxu0 %v436
        %v581 = vpop.f32.mrf.mxu0
        %v582 = vadd.f32 0.0, %v581
        %v583 = vpop.f32.mrf.mxu0
        %v584 = vadd.f32 0.0, %v583
        %585 = vmatmul.bf16.gmra.mxu0 %v439
        %v586 = vpop.f32.mrf.mxu0
        %v587 = vadd.f32 0.0, %v586
        %v588 = vpop.f32.mrf.mxu0
        %v589 = vadd.f32 0.0, %v588
        %590 = vmatmul.bf16.gmra.mxu0 %v442
        %v591 = vpop.f32.mrf.mxu0
        %v592 = vadd.f32 0.0, %v591
        %v593 = vpop.f32.mrf.mxu0
        %v594 = vadd.f32 0.0, %v593
        %595 = vmatmul.bf16.gmra.mxu0 %v445
        %v596 = vpop.f32.mrf.mxu0
        %v597 = vadd.f32 0.0, %v596
        %v598 = vpop.f32.mrf.mxu0
        %v599 = vadd.f32 0.0, %v598
        %600 = vmatmul.bf16.gmra.mxu0 %v448
        %v601 = vpop.f32.mrf.mxu0
        %v602 = vadd.f32 0.0, %v601
        %v603 = vpop.f32.mrf.mxu0
        %v604 = vadd.f32 0.0, %v603
        %605 = vmatmul.bf16.gmra.mxu0 %v451
        %v606 = vpop.f32.mrf.mxu0
        %v607 = vadd.f32 0.0, %v606
        %v608 = vpop.f32.mrf.mxu0
        %v609 = vadd.f32 0.0, %v608
        %610 = vmatmul.bf16.gmra.mxu0 %v454
        %v611 = vpop.f32.mrf.mxu0
        %v612 = vadd.f32 0.0, %v611
        %v613 = vpop.f32.mrf.mxu0
        %v614 = vadd.f32 0.0, %v613
        %615 = vmatmul.bf16.gmra.mxu0 %v457
        %v616 = vpop.f32.mrf.mxu0
        %v617 = vadd.f32 0.0, %v616
        %v618 = vpop.f32.mrf.mxu0
        %v619 = vadd.f32 0.0, %v618
        %620 = vmatmul.bf16.gmra.mxu0 %v460
        %v621 = vpop.f32.mrf.mxu0
        %v622 = vadd.f32 0.0, %v621
        %v623 = vpop.f32.mrf.mxu0
        %v624 = vadd.f32 0.0, %v623
        %625 = vmatmul.bf16.gmra.mxu0 %v463
        %v626 = vpop.f32.mrf.mxu0
        %v627 = vadd.f32 0.0, %v626
        %v628 = vpop.f32.mrf.mxu0
        %v629 = vadd.f32 0.0, %v628
        %630 = vmatmul.bf16.gmra.mxu0 %v466
        %v631 = vpop.f32.mrf.mxu0
        %v632 = vadd.f32 0.0, %v631
        %v633 = vpop.f32.mrf.mxu0
        %v634 = vadd.f32 0.0, %v633
        %635 = vmatmul.bf16.gmra.mxu0 %v469
        %v636 = vpop.f32.mrf.mxu0
        %v637 = vadd.f32 0.0, %v636
        %v638 = vpop.f32.mrf.mxu0
        %v639 = vadd.f32 0.0, %v638
        %640 = vmatmul.bf16.gmra.mxu0 %v472
        %v641 = vpop.f32.mrf.mxu0
        %v642 = vadd.f32 0.0, %v641
        %v643 = vpop.f32.mrf.mxu0
        %v644 = vadd.f32 0.0, %v643
        %645 = vmatmul.bf16.gmra.mxu0 %v475
        %v646 = vpop.f32.mrf.mxu0
        %v647 = vadd.f32 0.0, %v646
        %v648 = vpop.f32.mrf.mxu0
        %v649 = vadd.f32 0.0, %v648
        %650 = vmatmul.bf16.gmra.mxu0 %v478
        %v651 = vpop.f32.mrf.mxu0
        %v652 = vadd.f32 0.0, %v651
        %v653 = vpop.f32.mrf.mxu0
        %v654 = vadd.f32 0.0, %v653
        %655 = vmatmul.bf16.gmra.mxu0 %v481
        %v656 = vpop.f32.mrf.mxu0
        %v657 = vadd.f32 0.0, %v656
        %v658 = vpop.f32.mrf.mxu0
        %v659 = vadd.f32 0.0, %v658
        %660 = vdwg.mxu0
        %v661 = vmax.f32 %v493, %v582
        %662 = vmax.xlane.f32.xlu0 %v661
        %v663 = vpop.xlane.xlu0 %662
        %v664 = vmax.f32 %v495, %v584
        %665 = vmax.xlane.f32.xlu0 %v664
        %v666 = vpop.xlane.xlu0 %665
        %v667 = vmax.f32 %v498, %v587
        %668 = vmax.xlane.f32.xlu0 %v667
        %v669 = vpop.xlane.xlu0 %668
        %v670 = vmax.f32 %v500, %v589
        %671 = vmax.xlane.f32.xlu0 %v670
        %v672 = vpop.xlane.xlu0 %671
        %v673 = vmax.f32 %v503, %v592
        %674 = vmax.xlane.f32.xlu0 %v673
        %v675 = vpop.xlane.xlu0 %674
        %v676 = vmax.f32 %v505, %v594
        %677 = vmax.xlane.f32.xlu0 %v676
        %v678 = vpop.xlane.xlu0 %677
        %v679 = vmax.f32 %v508, %v597
        %680 = vmax.xlane.f32.xlu0 %v679
        %v681 = vpop.xlane.xlu0 %680
        %v682 = vmax.f32 %v510, %v599
        %683 = vmax.xlane.f32.xlu0 %v682
        %v684 = vpop.xlane.xlu0 %683
        %v685 = vmax.f32 %v513, %v602
        %686 = vmax.xlane.f32.xlu0 %v685
        %v687 = vpop.xlane.xlu0 %686
        %v688 = vmax.f32 %v515, %v604
        %689 = vmax.xlane.f32.xlu0 %v688
        %v690 = vpop.xlane.xlu0 %689
        %v691 = vmax.f32 %v518, %v607
        %692 = vmax.xlane.f32.xlu0 %v691
        %v693 = vpop.xlane.xlu0 %692
        %v694 = vmax.f32 %v520, %v609
        %695 = vmax.xlane.f32.xlu0 %v694
        %v696 = vpop.xlane.xlu0 %695
        %v697 = vmax.f32 %v523, %v612
        %698 = vmax.xlane.f32.xlu0 %v697
        %v699 = vpop.xlane.xlu0 %698
        %v700 = vmax.f32 %v525, %v614
        %701 = vmax.xlane.f32.xlu0 %v700
        %v702 = vpop.xlane.xlu0 %701
        %v703 = vmax.f32 %v528, %v617
        %704 = vmax.xlane.f32.xlu0 %v703
        %v705 = vpop.xlane.xlu0 %704
        %v706 = vmax.f32 %v530, %v619
        %707 = vmax.xlane.f32.xlu0 %v706
        %v708 = vpop.xlane.xlu0 %707
        %v709 = vmax.f32 %v533, %v622
        %710 = vmax.xlane.f32.xlu0 %v709
        %v711 = vpop.xlane.xlu0 %710
        %v712 = vmax.f32 %v535, %v624
        %713 = vmax.xlane.f32.xlu0 %v712
        %v714 = vpop.xlane.xlu0 %713
        %v715 = vmax.f32 %v538, %v627
        %716 = vmax.xlane.f32.xlu0 %v715
        %v717 = vpop.xlane.xlu0 %716
        %v718 = vmax.f32 %v540, %v629
        %719 = vmax.xlane.f32.xlu0 %v718
        %v720 = vpop.xlane.xlu0 %719
        %v721 = vmax.f32 %v543, %v632
        %722 = vmax.xlane.f32.xlu0 %v721
        %v723 = vpop.xlane.xlu0 %722
        %v724 = vmax.f32 %v545, %v634
        %725 = vmax.xlane.f32.xlu0 %v724
        %v726 = vpop.xlane.xlu0 %725
        %v727 = vmax.f32 %v548, %v637
        %728 = vmax.xlane.f32.xlu0 %v727
        %v729 = vpop.xlane.xlu0 %728
        %v730 = vmax.f32 %v550, %v639
        %731 = vmax.xlane.f32.xlu0 %v730
        %v732 = vpop.xlane.xlu0 %731
        %v733 = vmax.f32 %v553, %v642
        %734 = vmax.xlane.f32.xlu0 %v733
        %v735 = vpop.xlane.xlu0 %734
        %v736 = vmax.f32 %v555, %v644
        %737 = vmax.xlane.f32.xlu0 %v736
        %v738 = vpop.xlane.xlu0 %737
        %v739 = vmax.f32 %v558, %v647
        %740 = vmax.xlane.f32.xlu0 %v739
        %v741 = vpop.xlane.xlu0 %740
        %v742 = vmax.f32 %v560, %v649
        %743 = vmax.xlane.f32.xlu0 %v742
        %v744 = vpop.xlane.xlu0 %743
        %v745 = vmax.f32 %v563, %v652
        %746 = vmax.xlane.f32.xlu0 %v745
        %v747 = vpop.xlane.xlu0 %746
        %v748 = vmax.f32 %v565, %v654
        %749 = vmax.xlane.f32.xlu0 %v748
        %v750 = vpop.xlane.xlu0 %749
        %v751 = vmax.f32 %v568, %v657
        %752 = vmax.xlane.f32.xlu0 %v751
        %v753 = vpop.xlane.xlu0 %752
        %v754 = vmax.f32 %v570, %v659
        %755 = vmax.xlane.f32.xlu0 %v754
        %v756 = vpop.xlane.xlu0 %755
        %v757 = vsub.f32 %v493, %v663
        %v758 = vsub.f32 %v582, %v663
        %v759 = vsub.f32 %v495, %v666
        %v760 = vsub.f32 %v584, %v666
        %v761 = vsub.f32 %v498, %v669
        %v762 = vsub.f32 %v587, %v669
        %v763 = vsub.f32 %v500, %v672
        %v764 = vsub.f32 %v589, %v672
        %v765 = vsub.f32 %v503, %v675
        %v766 = vsub.f32 %v592, %v675
        %v767 = vsub.f32 %v505, %v678
        %v768 = vsub.f32 %v594, %v678
        %v769 = vsub.f32 %v508, %v681
        %v770 = vsub.f32 %v597, %v681
        %v771 = vsub.f32 %v510, %v684
        %v772 = vsub.f32 %v599, %v684
        %v773 = vsub.f32 %v513, %v687
        %v774 = vsub.f32 %v602, %v687
        %v775 = vsub.f32 %v515, %v690
        %v776 = vsub.f32 %v604, %v690
        %v777 = vsub.f32 %v518, %v693
        %v778 = vsub.f32 %v607, %v693
        %v779 = vsub.f32 %v520, %v696
        %v780 = vsub.f32 %v609, %v696
        %v781 = vsub.f32 %v523, %v699
        %v782 = vsub.f32 %v612, %v699
        %v783 = vsub.f32 %v525, %v702
        %v784 = vsub.f32 %v614, %v702
        %v785 = vsub.f32 %v528, %v705
        %v786 = vsub.f32 %v617, %v705
        %v787 = vsub.f32 %v530, %v708
        %v788 = vsub.f32 %v619, %v708
        %v789 = vsub.f32 %v533, %v711
        %v790 = vsub.f32 %v622, %v711
        %v791 = vsub.f32 %v535, %v714
        %v792 = vsub.f32 %v624, %v714
        %v793 = vsub.f32 %v538, %v717
        %v794 = vsub.f32 %v627, %v717
        %v795 = vsub.f32 %v540, %v720
        %v796 = vsub.f32 %v629, %v720
        %v797 = vsub.f32 %v543, %v723
        %v798 = vsub.f32 %v632, %v723
        %v799 = vsub.f32 %v545, %v726
        %v800 = vsub.f32 %v634, %v726
        %v801 = vsub.f32 %v548, %v729
        %v802 = vsub.f32 %v637, %v729
        %v803 = vsub.f32 %v550, %v732
        %v804 = vsub.f32 %v639, %v732
        %v805 = vsub.f32 %v553, %v735
        %v806 = vsub.f32 %v642, %v735
        %v807 = vsub.f32 %v555, %v738
        %v808 = vsub.f32 %v644, %v738
        %v809 = vsub.f32 %v558, %v741
        %v810 = vsub.f32 %v647, %v741
        %v811 = vsub.f32 %v560, %v744
        %v812 = vsub.f32 %v649, %v744
        %v813 = vsub.f32 %v563, %v747
        %v814 = vsub.f32 %v652, %v747
        %v815 = vsub.f32 %v565, %v750
        %v816 = vsub.f32 %v654, %v750
        %v817 = vsub.f32 %v568, %v753
        %v818 = vsub.f32 %v657, %v753
        %v819 = vsub.f32 %v570, %v756
        %v820 = vsub.f32 %v659, %v756
        %v821 = vpack.c.bf16 %v759, %v757
        %v822 = vpack.c.bf16 %v760, %v758
        %v823 = vpack.c.bf16 %v763, %v761
        %v824 = vpack.c.bf16 %v764, %v762
        %v825 = vpack.c.bf16 %v767, %v765
        %v826 = vpack.c.bf16 %v768, %v766
        %v827 = vpack.c.bf16 %v771, %v769
        %v828 = vpack.c.bf16 %v772, %v770
        %v829 = vpack.c.bf16 %v775, %v773
        %v830 = vpack.c.bf16 %v776, %v774
        %v831 = vpack.c.bf16 %v779, %v777
        %v832 = vpack.c.bf16 %v780, %v778
        %v833 = vpack.c.bf16 %v783, %v781
        %v834 = vpack.c.bf16 %v784, %v782
        %v835 = vpack.c.bf16 %v787, %v785
        %v836 = vpack.c.bf16 %v788, %v786
        %v837 = vpack.c.bf16 %v791, %v789
        %v838 = vpack.c.bf16 %v792, %v790
        %v839 = vpack.c.bf16 %v795, %v793
        %v840 = vpack.c.bf16 %v796, %v794
        %v841 = vpack.c.bf16 %v799, %v797
        %v842 = vpack.c.bf16 %v800, %v798
        %v843 = vpack.c.bf16 %v803, %v801
        %v844 = vpack.c.bf16 %v804, %v802
        %v845 = vpack.c.bf16 %v807, %v805
        %v846 = vpack.c.bf16 %v808, %v806
        %v847 = vpack.c.bf16 %v811, %v809
        %v848 = vpack.c.bf16 %v812, %v810
        %v849 = vpack.c.bf16 %v815, %v813
        %v850 = vpack.c.bf16 %v816, %v814
        %v851 = vpack.c.bf16 %v819, %v817
        %v852 = vpack.c.bf16 %v820, %v818
        %v853 = vunpack.c.l.bf16 %v821
        %v854 = vunpack.c.l.bf16 %v822
        %v855 = vunpack.c.h.bf16 %v821
        %v856 = vunpack.c.h.bf16 %v822
        %v857 = vunpack.c.l.bf16 %v823
        %v858 = vunpack.c.l.bf16 %v824
        %v859 = vunpack.c.h.bf16 %v823
        %v860 = vunpack.c.h.bf16 %v824
        %v861 = vunpack.c.l.bf16 %v825
        %v862 = vunpack.c.l.bf16 %v826
        %v863 = vunpack.c.h.bf16 %v825
        %v864 = vunpack.c.h.bf16 %v826
        %v865 = vunpack.c.l.bf16 %v827
        %v866 = vunpack.c.l.bf16 %v828
        %v867 = vunpack.c.h.bf16 %v827
        %v868 = vunpack.c.h.bf16 %v828
        %v869 = vunpack.c.l.bf16 %v829
        %v870 = vunpack.c.l.bf16 %v830
        %v871 = vunpack.c.h.bf16 %v829
        %v872 = vunpack.c.h.bf16 %v830
        %v873 = vunpack.c.l.bf16 %v831
        %v874 = vunpack.c.l.bf16 %v832
        %v875 = vunpack.c.h.bf16 %v831
        %v876 = vunpack.c.h.bf16 %v832
        %v877 = vunpack.c.l.bf16 %v833
        %v878 = vunpack.c.l.bf16 %v834
        %v879 = vunpack.c.h.bf16 %v833
        %v880 = vunpack.c.h.bf16 %v834
        %v881 = vunpack.c.l.bf16 %v835
        %v882 = vunpack.c.l.bf16 %v836
        %v883 = vunpack.c.h.bf16 %v835
        %v884 = vunpack.c.h.bf16 %v836
        %v885 = vunpack.c.l.bf16 %v837
        %v886 = vunpack.c.l.bf16 %v838
        %v887 = vunpack.c.h.bf16 %v837
        %v888 = vunpack.c.h.bf16 %v838
        %v889 = vunpack.c.l.bf16 %v839
        %v890 = vunpack.c.l.bf16 %v840
        %v891 = vunpack.c.h.bf16 %v839
        %v892 = vunpack.c.h.bf16 %v840
        %v893 = vunpack.c.l.bf16 %v841
        %v894 = vunpack.c.l.bf16 %v842
        %v895 = vunpack.c.h.bf16 %v841
        %v896 = vunpack.c.h.bf16 %v842
        %v897 = vunpack.c.l.bf16 %v843
        %v898 = vunpack.c.l.bf16 %v844
        %v899 = vunpack.c.h.bf16 %v843
        %v900 = vunpack.c.h.bf16 %v844
        %v901 = vunpack.c.l.bf16 %v845
        %v902 = vunpack.c.l.bf16 %v846
        %v903 = vunpack.c.h.bf16 %v845
        %v904 = vunpack.c.h.bf16 %v846
        %v905 = vunpack.c.l.bf16 %v847
        %v906 = vunpack.c.l.bf16 %v848
        %v907 = vunpack.c.h.bf16 %v847
        %v908 = vunpack.c.h.bf16 %v848
        %v909 = vunpack.c.l.bf16 %v849
        %v910 = vunpack.c.l.bf16 %v850
        %v911 = vunpack.c.h.bf16 %v849
        %v912 = vunpack.c.h.bf16 %v850
        %v913 = vunpack.c.l.bf16 %v851
        %v914 = vunpack.c.l.bf16 %v852
        %v915 = vunpack.c.h.bf16 %v851
        %v916 = vunpack.c.h.bf16 %v852
        %v917 = vmul.f32 %v853, 1.442695
        %v918 = vpow.pop %v917
        %v919 = vmul.f32 %v854, 1.442695
        %v920 = vpow.pop %v919
        %v921 = vmul.f32 %v855, 1.442695
        %v922 = vpow.pop %v921
        %v923 = vmul.f32 %v856, 1.442695
        %v924 = vpow.pop %v923
        %v925 = vmul.f32 %v857, 1.442695
        %v926 = vpow.pop %v925
        %v927 = vmul.f32 %v858, 1.442695
        %v928 = vpow.pop %v927
        %v929 = vmul.f32 %v859, 1.442695
        %v930 = vpow.pop %v929
        %v931 = vmul.f32 %v860, 1.442695
        %v932 = vpow.pop %v931
        %v933 = vmul.f32 %v861, 1.442695
        %v934 = vpow.pop %v933
        %v935 = vmul.f32 %v862, 1.442695
        %v936 = vpow.pop %v935
        %v937 = vmul.f32 %v863, 1.442695
        %v938 = vpow.pop %v937
        %v939 = vmul.f32 %v864, 1.442695
        %v940 = vpow.pop %v939
        %v941 = vmul.f32 %v865, 1.442695
        %v942 = vpow.pop %v941
        %v943 = vmul.f32 %v866, 1.442695
        %v944 = vpow.pop %v943
        %v945 = vmul.f32 %v867, 1.442695
        %v946 = vpow.pop %v945
        %v947 = vmul.f32 %v868, 1.442695
        %v948 = vpow.pop %v947
        %v949 = vmul.f32 %v869, 1.442695
        %v950 = vpow.pop %v949
        %v951 = vmul.f32 %v870, 1.442695
        %v952 = vpow.pop %v951
        %v953 = vmul.f32 %v871, 1.442695
        %v954 = vpow.pop %v953
        %v955 = vmul.f32 %v872, 1.442695
        %v956 = vpow.pop %v955
        %v957 = vmul.f32 %v873, 1.442695
        %v958 = vpow.pop %v957
        %v959 = vmul.f32 %v874, 1.442695
        %v960 = vpow.pop %v959
        %v961 = vmul.f32 %v875, 1.442695
        %v962 = vpow.pop %v961
        %v963 = vmul.f32 %v876, 1.442695
        %v964 = vpow.pop %v963
        %v965 = vmul.f32 %v877, 1.442695
        %v966 = vpow.pop %v965
        %v967 = vmul.f32 %v878, 1.442695
        %v968 = vpow.pop %v967
        %v969 = vmul.f32 %v879, 1.442695
        %v970 = vpow.pop %v969
        %v971 = vmul.f32 %v880, 1.442695
        %v972 = vpow.pop %v971
        %v973 = vmul.f32 %v881, 1.442695
        %v974 = vpow.pop %v973
        %v975 = vmul.f32 %v882, 1.442695
        %v976 = vpow.pop %v975
        %v977 = vmul.f32 %v883, 1.442695
        %v978 = vpow.pop %v977
        %v979 = vmul.f32 %v884, 1.442695
        %v980 = vpow.pop %v979
        %v981 = vmul.f32 %v885, 1.442695
        %v982 = vpow.pop %v981
        %v983 = vmul.f32 %v886, 1.442695
        %v984 = vpow.pop %v983
        %v985 = vmul.f32 %v887, 1.442695
        %v986 = vpow.pop %v985
        %v987 = vmul.f32 %v888, 1.442695
        %v988 = vpow.pop %v987
        %v989 = vmul.f32 %v889, 1.442695
        %v990 = vpow.pop %v989
        %v991 = vmul.f32 %v890, 1.442695
        %v992 = vpow.pop %v991
        %v993 = vmul.f32 %v891, 1.442695
        %v994 = vpow.pop %v993
        %v995 = vmul.f32 %v892, 1.442695
        %v996 = vpow.pop %v995
        %v997 = vmul.f32 %v893, 1.442695
        %v998 = vpow.pop %v997
        %v999 = vmul.f32 %v894, 1.442695
        %v1000 = vpow.pop %v999
        %v1001 = vmul.f32 %v895, 1.442695
        %v1002 = vpow.pop %v1001
        %v1003 = vmul.f32 %v896, 1.442695
        %v1004 = vpow.pop %v1003
        %v1005 = vmul.f32 %v897, 1.442695
        %v1006 = vpow.pop %v1005
        %v1007 = vmul.f32 %v898, 1.442695
        %v1008 = vpow.pop %v1007
        %v1009 = vmul.f32 %v899, 1.442695
        %v1010 = vpow.pop %v1009
        %v1011 = vmul.f32 %v900, 1.442695
        %v1012 = vpow.pop %v1011
        %v1013 = vmul.f32 %v901, 1.442695
        %v1014 = vpow.pop %v1013
        %v1015 = vmul.f32 %v902, 1.442695
        %v1016 = vpow.pop %v1015
        %v1017 = vmul.f32 %v903, 1.442695
        %v1018 = vpow.pop %v1017
        %v1019 = vmul.f32 %v904, 1.442695
        %v1020 = vpow.pop %v1019
        %v1021 = vmul.f32 %v905, 1.442695
        %v1022 = vpow.pop %v1021
        %v1023 = vmul.f32 %v906, 1.442695
        %v1024 = vpow.pop %v1023
        %v1025 = vmul.f32 %v907, 1.442695
        %v1026 = vpow.pop %v1025
        %v1027 = vmul.f32 %v908, 1.442695
        %v1028 = vpow.pop %v1027
        %v1029 = vmul.f32 %v909, 1.442695
        %v1030 = vpow.pop %v1029
        %v1031 = vmul.f32 %v910, 1.442695
        %v1032 = vpow.pop %v1031
        %v1033 = vmul.f32 %v911, 1.442695
        %v1034 = vpow.pop %v1033
        %v1035 = vmul.f32 %v912, 1.442695
        %v1036 = vpow.pop %v1035
        %v1037 = vmul.f32 %v913, 1.442695
        %v1038 = vpow.pop %v1037
        %v1039 = vmul.f32 %v914, 1.442695
        %v1040 = vpow.pop %v1039
        %v1041 = vmul.f32 %v915, 1.442695
        %v1042 = vpow.pop %v1041
        %v1043 = vmul.f32 %v916, 1.442695
        %v1044 = vpow.pop %v1043
        %v1045 = vpack.c.bf16 %v922, %v918
        %v1046 = vpack.c.bf16 %v924, %v920
        %v1047 = vpack.c.bf16 %v930, %v926
        %v1048 = vpack.c.bf16 %v932, %v928
        %v1049 = vpack.c.bf16 %v938, %v934
        %v1050 = vpack.c.bf16 %v940, %v936
        %v1051 = vpack.c.bf16 %v946, %v942
        %v1052 = vpack.c.bf16 %v948, %v944
        %v1053 = vpack.c.bf16 %v954, %v950
        %v1054 = vpack.c.bf16 %v956, %v952
        %v1055 = vpack.c.bf16 %v962, %v958
        %v1056 = vpack.c.bf16 %v964, %v960
        %v1057 = vpack.c.bf16 %v970, %v966
        %v1058 = vpack.c.bf16 %v972, %v968
        %v1059 = vpack.c.bf16 %v978, %v974
        %v1060 = vpack.c.bf16 %v980, %v976
        %v1061 = vpack.c.bf16 %v986, %v982
        %v1062 = vpack.c.bf16 %v988, %v984
        %v1063 = vpack.c.bf16 %v994, %v990
        %v1064 = vpack.c.bf16 %v996, %v992
        %v1065 = vpack.c.bf16 %v1002, %v998
        %v1066 = vpack.c.bf16 %v1004, %v1000
        %v1067 = vpack.c.bf16 %v1010, %v1006
        %v1068 = vpack.c.bf16 %v1012, %v1008
        %v1069 = vpack.c.bf16 %v1018, %v1014
        %v1070 = vpack.c.bf16 %v1020, %v1016
        %v1071 = vpack.c.bf16 %v1026, %v1022
        %v1072 = vpack.c.bf16 %v1028, %v1024
        %v1073 = vpack.c.bf16 %v1034, %v1030
        %v1074 = vpack.c.bf16 %v1036, %v1032
        %v1075 = vpack.c.bf16 %v1042, %v1038
        %v1076 = vpack.c.bf16 %v1044, %v1040
        %1077 = vmatpush.bf16.xpose.msra.mxu0 %v1059
        %1078 = vmatpush.bf16.xpose.msra.mxu0 %v1057
        %1079 = vmatpush.bf16.xpose.msra.mxu0 %v1055
        %1080 = vmatpush.bf16.xpose.msra.mxu0 %v1053
        %1081 = vmatpush.bf16.xpose.msra.mxu0 %v1051
        %1082 = vmatpush.bf16.xpose.msra.mxu0 %v1049
        %1083 = vmatpush.bf16.xpose.msra.mxu0 %v1047
        %1084 = vmatpush.bf16.xpose.msra.mxu0 %v1045
        %1085 = vmatmul.bf16.gmra.mxu0 %v405
        %v1086 = vpop.f32.mrf.mxu0
        %v1087 = vadd.f32 0.0, %v1086
        %v1088 = vpop.f32.mrf.mxu0
        %v1089 = vadd.f32 0.0, %v1088
        %1090 = vmatmul.bf16.gmra.mxu0 %v407
        %v1091 = vpop.f32.mrf.mxu0
        %v1092 = vadd.f32 0.0, %v1091
        %v1093 = vpop.f32.mrf.mxu0
        %v1094 = vadd.f32 0.0, %v1093
        %1095 = vmatmul.bf16.gmra.mxu0 %v409
        %v1096 = vpop.f32.mrf.mxu0
        %v1097 = vadd.f32 0.0, %v1096
        %v1098 = vpop.f32.mrf.mxu0
        %1099 = vdwg.mxu0
        %1100 = vmatpush.bf16.xpose.msra.mxu0 %v1060
        %1101 = vmatpush.bf16.xpose.msra.mxu0 %v1058
        %1102 = vmatpush.bf16.xpose.msra.mxu0 %v1056
        %1103 = vmatpush.bf16.xpose.msra.mxu0 %v1054
        %1104 = vmatpush.bf16.xpose.msra.mxu0 %v1052
        %1105 = vmatpush.bf16.xpose.msra.mxu0 %v1050
        %1106 = vmatpush.bf16.xpose.msra.mxu0 %v1048
        %1107 = vmatpush.bf16.xpose.msra.mxu0 %v1046
        %1108 = vmatmul.bf16.gmra.mxu0 %v406
        %v1109 = vpop.f32.mrf.mxu0
        %v1110 = vadd.f32 %v1087, %v1109
        %v1111 = vpop.f32.mrf.mxu0
        %v1112 = vadd.f32 %v1089, %v1111
        %1113 = vmatmul.bf16.gmra.mxu0 %v408
        %v1114 = vpop.f32.mrf.mxu0
        %v1115 = vadd.f32 %v1092, %v1114
        %v1116 = vpop.f32.mrf.mxu0
        %v1117 = vadd.f32 %v1094, %v1116
        %1118 = vmatmul.bf16.gmra.mxu0 %v410
        %v1119 = vpop.f32.mrf.mxu0
        %v1120 = vadd.f32 %v1097, %v1119
        %v1121 = vpop.f32.mrf.mxu0
        %1122 = vdwg.mxu0
        %1123 = vmatpush.bf16.xpose.msra.mxu0 %v1075
        %1124 = vmatpush.bf16.xpose.msra.mxu0 %v1073
        %1125 = vmatpush.bf16.xpose.msra.mxu0 %v1071
        %1126 = vmatpush.bf16.xpose.msra.mxu0 %v1069
        %1127 = vmatpush.bf16.xpose.msra.mxu0 %v1067
        %1128 = vmatpush.bf16.xpose.msra.mxu0 %v1065
        %1129 = vmatpush.bf16.xpose.msra.mxu0 %v1063
        %1130 = vmatpush.bf16.xpose.msra.mxu0 %v1061
        %1131 = vmatmul.bf16.gmra.mxu0 %v405
        %v1132 = vpop.f32.mrf.mxu0
        %v1133 = vadd.f32 0.0, %v1132
        %v1134 = vpop.f32.mrf.mxu0
        %v1135 = vadd.f32 0.0, %v1134
        %1136 = vmatmul.bf16.gmra.mxu0 %v407
        %v1137 = vpop.f32.mrf.mxu0
        %v1138 = vadd.f32 0.0, %v1137
        %v1139 = vpop.f32.mrf.mxu0
        %v1140 = vadd.f32 0.0, %v1139
        %1141 = vmatmul.bf16.gmra.mxu0 %v409
        %v1142 = vpop.f32.mrf.mxu0
        %v1143 = vadd.f32 0.0, %v1142
        %v1144 = vpop.f32.mrf.mxu0
        %1145 = vdwg.mxu0
        %1146 = vmatpush.bf16.xpose.msra.mxu0 %v1076
        %1147 = vmatpush.bf16.xpose.msra.mxu0 %v1074
        %1148 = vmatpush.bf16.xpose.msra.mxu0 %v1072
        %1149 = vmatpush.bf16.xpose.msra.mxu0 %v1070
        %1150 = vmatpush.bf16.xpose.msra.mxu0 %v1068
        %1151 = vmatpush.bf16.xpose.msra.mxu0 %v1066
        %1152 = vmatpush.bf16.xpose.msra.mxu0 %v1064
        %1153 = vmatpush.bf16.xpose.msra.mxu0 %v1062
        %1154 = vmatmul.bf16.gmra.mxu0 %v406
        %v1155 = vpop.f32.mrf.mxu0
        %v1156 = vadd.f32 %v1133, %v1155
        %v1157 = vpop.f32.mrf.mxu0
        %v1158 = vadd.f32 %v1135, %v1157
        %1159 = vmatmul.bf16.gmra.mxu0 %v408
        %v1160 = vpop.f32.mrf.mxu0
        %v1161 = vadd.f32 %v1138, %v1160
        %v1162 = vpop.f32.mrf.mxu0
        %v1163 = vadd.f32 %v1140, %v1162
        %1164 = vmatmul.bf16.gmra.mxu0 %v410
        %v1165 = vpop.f32.mrf.mxu0
        %v1166 = vadd.f32 %v1143, %v1165
        %v1167 = vpop.f32.mrf.mxu0
        %1168 = vdwg.mxu0
        %v1169 = vrcp.pop %v1120
        %v1170 = vrcp.pop %v1166
        %v1171 = vperm.slane %v1169, 0
        %v1172 = vperm.slane %v1170, 0
        %v1173 = vmul.f32 %v1110, %v1171
        %v1174 = vmul.f32 %v1156, %v1172
        %v1175 = vmul.f32 %v1112, %v1171
        %v1176 = vmul.f32 %v1158, %v1172
        %v1177 = vmul.f32 %v1115, %v1171
        %v1178 = vmul.f32 %v1161, %v1172
        %v1179 = vmul.f32 %v1117, %v1171
        %v1180 = vmul.f32 %v1163, %v1172
        %v1181 = vstv %s220
        %v1182 = vmul.f32 %v1181, %v1173
        %v1183 = vmul.f32 %v1181, %v1174
        %v1184 = vmul.f32 %v1181, %v1175
        %v1185 = vmul.f32 %v1181, %v1176
        %v1186 = vmul.f32 %v1181, %v1177
        %v1187 = vmul.f32 %v1181, %v1178
        %v1188 = vmul.f32 %v1181, %v1179
        %v1189 = vmul.f32 %v1181, %v1180
        %v1190 = vadd.f32 %v1182, %v221
        %v1191 = vadd.f32 %v1183, %v222
        %v1192 = vadd.f32 %v1184, %v223
        %v1193 = vadd.f32 %v1185, %v224
        %v1194 = vadd.f32 %v1186, %v225
        %v1195 = vadd.f32 %v1187, %v226
        %v1196 = vadd.f32 %v1188, %v227
        %v1197 = vadd.f32 %v1189, %v228
        %1198 = vst [vmem:[%s218] sm:$0xff] %v1190
        %1199 = vst [vmem:[%s218 + $0x8] sm:$0xff] %v1191
        %1200 = vst [vmem:[%s218 + $0x10] sm:$0xff] %v1192
        %1201 = vst [vmem:[%s218 + $0x18] sm:$0xff] %v1193
        %1202 = vst [vmem:[%s218 + $0x20] sm:$0xff] %v1194
        %1203 = vst [vmem:[%s218 + $0x28] sm:$0xff] %v1195
        %1204 = vst [vmem:[%s218 + $0x30] sm:$0xff] %v1196
        %1205 = vst [vmem:[%s218 + $0x38] sm:$0xff] %v1197
        %s1206 = sand.u32 %s119, 1
        %s1207 = scalar_lea.sflag [#allocation5], %s1206
        %s1208 = sand.u32 %s119, 1
        %s1209 = smul.addr %s1208, 64
        %s1210 = scalar_lea.vmem [#allocation6], %s1209
        // Predicated region
        $region41: #{tpu_custom_call.1} parent=35 // pred_check
          %p1211 = pneg %p129
        $region42: #{tpu_custom_call.1} parent=35 // pred_check_branch
          %1213 = sbr.rel (%p1211) target = $region44
        $region43: #{tpu_custom_call.1} parent=35 // pred_region
          %1215 = vsyncadd %s1207, 0
          %s1216 = smul.addr %s22, 8
          %s1217 = smul.addr %s1216, 8
          %s1218 = scalar_lea.hbm %s4, %s1217
          %s1219 = sshll.u32 %s1210, 4
          %s1220 = int_to_ptr.vmem [resolvable:$true] %s1219
          %s1221 = sshll.u32 %s1218, 4
          %s1222 = int_to_ptr.hbm [resolvable:$true] %s1221
          %1227 = dma.vmem_to_hbm [thread:$0]  %s1220, 1024, %s1222, %s1207, 256, 256, 16
        $region44: #{tpu_custom_call.1} parent=35 // pred_fallthru
          _
      $region36: #{tpu_custom_call.1} parent=5 // pred_fallthru
        _
      %p1228 = scmp.le.s32.totalorder 2, %s17
      // Predicated region
      $region45: #{tpu_custom_call.1} parent=5 // pred_check
        %p1229 = pneg %p1228
      $region46: #{tpu_custom_call.1} parent=5 // pred_check_branch
        %1231 = sbr.rel (%p1229) target = $region48
      $region47: #{tpu_custom_call.1} parent=5 // pred_region
        %s1232 = ssub.s32 %s17, 2
        // Predicated region
        $region49: #{tpu_custom_call.1} parent=47 // pred_check
          %p1233 = pneg %p135
        $region50: #{tpu_custom_call.1} parent=47 // pred_check_branch
          %1235 = sbr.rel (%p1233) target = $region52
        $region51: #{tpu_custom_call.1} parent=47 // pred_region
          %s1236 = sand.u32 %s120, 1
          %s1237 = scalar_lea.sflag [#allocation5], %s1236
          %s1238 = sand.u32 %s120, 1
          %s1239 = smul.addr %s1238, 64
          %s1240 = scalar_lea.vmem [#allocation6], %s1239
          %1242 = dma.done %s1237, 1024
        $region52: #{tpu_custom_call.1} parent=47 // pred_fallthru
          _
      $region48: #{tpu_custom_call.1} parent=5 // pred_fallthru
        _
    $region6: #{tpu_custom_call.1} parent=1 // loop_footer
      %s21 = sadd.s32 1, %s17
    $region7: #{tpu_custom_call.1} parent=1 // loop_footer_branch
      %16 = sbr.rel target = $region3
    $region8: #{tpu_custom_call.1} parent=1 // loop_exit
      _
    %1243 = vsyncpa [#allocation4], 1
    %s1244 = scalar_lea.sflag [#allocation4], 1
    %1245 = vsyncpa %s1244, 1
    %1246 = vsyncpa [#allocation5], 1
    %s1247 = scalar_lea.sflag [#allocation5], 1
    %1248 = vsyncpa %s1247, 1

</llo_original>
